<compile_context>
chip_gen: v7x
topology: tpu7x:2x2x1
jax: 0.10.0
libtpu: 0.0.40
codegen_flags: <defaults>
</compile_context>

<pallas_src>
import functools

import jax
import jax.numpy as jnp
from jax.experimental import pallas as pl
from jax.experimental.pallas import tpu as pltpu


def _channel_gate_kernel(x_ref, w1_ref, b1_ref, w2_ref, b2_ref, o_ref, *, inv_s):
    # x_ref : (Nb, C, S)  Nb batch elements, channels on sublanes, spatial on lanes
    # w1_ref: (Ch, C)     PyTorch Linear(C -> Ch).weight
    # b1_ref: (1, Ch)
    # w2_ref: (C, Ch)     PyTorch Linear(Ch -> C).weight
    # b2_ref: (1, C)
    # o_ref : (Nb, C, S)
    nb = x_ref.shape[0]

    # Global pooling over the full spatial volume, accumulated in f32 regardless
    # of the I/O dtype (matches PyTorch's f32 pooling / Linear).
    xf = x_ref[...].astype(jnp.float32)                  # (Nb, C, S)
    avg = jnp.sum(xf, axis=2) * inv_s                    # (Nb, C)
    mx = jnp.max(xf, axis=2)                             # (Nb, C)
    pooled = jnp.concatenate([avg, mx], axis=0)          # (2*Nb, C)

    w1 = w1_ref[...]
    b1 = b1_ref[...]
    w2 = w2_ref[...]
    b2 = b2_ref[...]

    # One matmul pair for avg + max and all Nb batch elements.
    # pooled @ w1^T via dot_general (contract the C axis, no physical transpose).
    h = jax.lax.dot_general(
        pooled, w1, (((1,), (1,)), ((), ())),
        preferred_element_type=jnp.float32) + b1          # (2*Nb, Ch)
    h = jnp.maximum(h, 0.0)
    a = jax.lax.dot_general(
        h, w2, (((1,), (1,)), ((), ())),
        preferred_element_type=jnp.float32) + b2          # (2*Nb, C)

    att = a[:nb] + a[nb:]                                 # (Nb, C)  avg-MLP + max-MLP
    scale = jax.nn.sigmoid(att).astype(o_ref.dtype)       # EUP

    # Re-load x from VMEM (cheap) and broadcast the per-(batch, channel) scale
    # across the lane (spatial) axis; lane-dense store.
    o_ref[...] = (x_ref[...] * scale[:, :, None]).astype(o_ref.dtype)


def _choose_block_batch(n, slab_bytes, target_bytes):
    """Largest Nb <= target that divides N, keeping >= 2 grid steps when N >= 2."""
    target = max(1, target_bytes // max(1, slab_bytes))
    if n >= 2:
        target = min(target, n // 2)   # keep >= 2 grid steps for 2-TC chips (v7x)
    target = max(1, min(target, n))
    for nb in range(target, 0, -1):
        if n % nb == 0:
            return nb
    return 1


def channel_gate(x, w1, b1, w2, b2, *, target_block_bytes=2 << 20):
    """ChannelGate forward.

    x: (N, C, D, H, W); w1: (Ch, C); b1: (Ch,); w2: (C, Ch); b2: (C,).
    """
    N, C, D, H, W = x.shape
    S = D * H * W
    Ch = w1.shape[0]
    assert w1.shape == (Ch, C) and w2.shape == (C, Ch)
    assert b1.shape == (Ch,) and b2.shape == (C,)

    x2 = x.reshape(N, C, S)               # contiguous view of NCDHW -> (N, C, S)
    b1r = b1.reshape(1, Ch)
    b2r = b2.reshape(1, C)

    nb = _choose_block_batch(N, C * S * x.dtype.itemsize, target_block_bytes)
    grid = (N // nb,)                     # nb divides N -> no ragged last block

    kernel = functools.partial(_channel_gate_kernel, inv_s=1.0 / float(S))

    itemsize = x.dtype.itemsize
    cost = pl.CostEstimate(
        flops=int(3 * N * C * S + 8 * N * C * Ch),      # reduces + multiply + tiny MLP
        transcendentals=int(N * C),                     # sigmoid
        bytes_accessed=int(2 * N * C * S * itemsize),   # one read + one write of x
    )

    y = pl.pallas_call(
        kernel,
        out_shape=jax.ShapeDtypeStruct((N, C, S), x.dtype),
        grid_spec=pltpu.PrefetchScalarGridSpec(
            num_scalar_prefetch=0,
            grid=grid,
            in_specs=[
                pl.BlockSpec((nb, C, S), lambda n: (n, 0, 0)),   # x slab, Nb batches
                pl.BlockSpec((Ch, C), lambda n: (0, 0)),         # w1 (resident)
                pl.BlockSpec((1, Ch), lambda n: (0, 0)),         # b1
                pl.BlockSpec((C, Ch), lambda n: (0, 0)),         # w2
                pl.BlockSpec((1, C), lambda n: (0, 0)),          # b2
            ],
            out_specs=pl.BlockSpec((nb, C, S), lambda n: (n, 0, 0)),
        ),
        compiler_params=pltpu.CompilerParams(
            dimension_semantics=("parallel",)),
        cost_estimate=cost,
    )(x2, w1, b1r, w2, b2r)

    return y.reshape(N, C, D, H, W)


def _reference(x, w1, b1, w2, b2):
    """Pure-JAX reference with PyTorch ChannelGate semantics."""
    N, C = x.shape[0], x.shape[1]
    xf = x.reshape(N, C, -1)
    avg = xf.mean(axis=-1)                         # (N, C)
    mx = xf.max(axis=-1)                           # (N, C)

    def mlp(v):                                    # (N, C) -> (N, C)
        h = jnp.maximum(v @ w1.T + b1, 0.0)
        return h @ w2.T + b2

    att = mlp(avg) + mlp(mx)                       # (N, C)
    scale = jax.nn.sigmoid(att)                    # (N, C)
    return x * scale[:, :, None, None, None]


if __name__ == "__main__":
    # Small shapes consistent with the module: 5D input (N, C, D, H, W),
    # gate_channels=64, reduction_ratio=16 -> hidden=4.  N=8 exercises the
    # multi-batch block (Nb=4) and a 2-step parallel grid.
    N, C, D, H, W = 8, 64, 4, 8, 8
    reduction_ratio = 16
    Ch = C // reduction_ratio

    key = jax.random.PRNGKey(0)
    kx, k1, k2, k3, k4 = jax.random.split(key, 5)
    x = jax.random.normal(kx, (N, C, D, H, W), jnp.float32)
    w1 = jax.random.normal(k1, (Ch, C), jnp.float32) * 0.1   # Linear(C -> Ch).weight
    b1 = jax.random.normal(k2, (Ch,), jnp.float32) * 0.1
    w2 = jax.random.normal(k3, (C, Ch), jnp.float32) * 0.1   # Linear(Ch -> C).weight
    b2 = jax.random.normal(k4, (C,), jnp.float32) * 0.1

    y = channel_gate(x, w1, b1, w2, b2)
    y = jax.block_until_ready(y)

    y_ref = _reference(x, w1, b1, w2, b2)
    assert y.shape == x.shape
    assert jnp.allclose(y, y_ref, atol=1e-4, rtol=1e-4)

    print("KERNEL_OK")
</pallas_src>

<mosaic_0001>
module attributes {stable_mosaic.version = 11 : i64} {
  func.func @_channel_gate_kernel(%arg0: i32, %arg1: memref<4x64x256xf32, #tpu.memory_space<vmem>>, %arg2: memref<4x64xf32, #tpu.memory_space<vmem>>, %arg3: memref<1x4xf32, #tpu.memory_space<vmem>>, %arg4: memref<64x4xf32, #tpu.memory_space<vmem>>, %arg5: memref<1x64xf32, #tpu.memory_space<vmem>>, %arg6: memref<4x64x256xf32, #tpu.memory_space<vmem>>) attributes {dimension_semantics = [#tpu.dimension_semantics<parallel>], iteration_bounds = array<i64: 2>, scalar_prefetch = 0 : i64, scratch_operands = 0 : i64, tpu.core_type = #tpu.core_type<tc>, window_params = [{transform_indices = @transform_0, window_bounds = array<i64: 4, 64, 256>}, {pipeline_mode = #tpu.pipeline_mode<synchronous>, transform_indices = @transform_1, window_bounds = array<i64: 4, 64>}, {pipeline_mode = #tpu.pipeline_mode<synchronous>, transform_indices = @transform_2, window_bounds = array<i64: 1, 4>}, {pipeline_mode = #tpu.pipeline_mode<synchronous>, transform_indices = @transform_3, window_bounds = array<i64: 64, 4>}, {pipeline_mode = #tpu.pipeline_mode<synchronous>, transform_indices = @transform_4, window_bounds = array<i64: 1, 64>}, {transform_indices = @transform_5, window_bounds = array<i64: 4, 64, 256>}]} {
    %c0 = arith.constant 0 : index
    %c0_0 = arith.constant 0 : index
    %c0_1 = arith.constant 0 : index
    %0 = vector.load %arg1[%c0, %c0_0, %c0_1] : memref<4x64x256xf32, #tpu.memory_space<vmem>>, vector<4x64x256xf32>
    %cst = arith.constant dense<0.000000e+00> : vector<4x64xf32>
    %1 = vector.multi_reduction <add>, %0, %cst [2] : vector<4x64x256xf32> to vector<4x64xf32>
    %cst_2 = arith.constant 3.906250e-03 : f32
    %2 = vector.broadcast %cst_2 : f32 to vector<4x64xf32>
    %3 = arith.mulf %1, %2 : vector<4x64xf32>
    %cst_3 = arith.constant dense<0xFF800000> : vector<4x64xf32>
    %4 = vector.multi_reduction <maximumf>, %0, %cst_3 [2] : vector<4x64x256xf32> to vector<4x64xf32>
    %5 = tpu.concatenate %3, %4 in 0 : vector<4x64xf32>, vector<4x64xf32> -> vector<8x64xf32>
    %c0_4 = arith.constant 0 : index
    %c0_5 = arith.constant 0 : index
    %6 = vector.load %arg2[%c0_4, %c0_5] : memref<4x64xf32, #tpu.memory_space<vmem>>, vector<4x64xf32>
    %c0_6 = arith.constant 0 : index
    %c0_7 = arith.constant 0 : index
    %7 = vector.load %arg3[%c0_6, %c0_7] : memref<1x4xf32, #tpu.memory_space<vmem>>, vector<1x4xf32>
    %c0_8 = arith.constant 0 : index
    %c0_9 = arith.constant 0 : index
    %8 = vector.load %arg4[%c0_8, %c0_9] : memref<64x4xf32, #tpu.memory_space<vmem>>, vector<64x4xf32>
    %c0_10 = arith.constant 0 : index
    %c0_11 = arith.constant 0 : index
    %9 = vector.load %arg5[%c0_10, %c0_11] : memref<1x64xf32, #tpu.memory_space<vmem>>, vector<1x64xf32>
    %cst_12 = arith.constant dense<0.000000e+00> : vector<8x4xf32>
    %10 = tpu.matmul %5, %6, %cst_12 {dimension_numbers = #tpu.dot_dimension_numbers<[1], [1], [0], [0], [0, 0, 1, 0], [], []>} : vector<8x64xf32>, vector<4x64xf32>, vector<8x4xf32> -> vector<8x4xf32>
    %11 = vector.broadcast %7 : vector<1x4xf32> to vector<8x4xf32>
    %12 = arith.addf %10, %11 : vector<8x4xf32>
    %cst_13 = arith.constant 0.000000e+00 : f32
    %13 = vector.broadcast %cst_13 : f32 to vector<8x4xf32>
    %14 = arith.maximumf %12, %13 : vector<8x4xf32>
    %cst_14 = arith.constant dense<0.000000e+00> : vector<8x64xf32>
    %15 = tpu.matmul %14, %8, %cst_14 {dimension_numbers = #tpu.dot_dimension_numbers<[1], [1], [0], [0], [0, 0, 1, 0], [], []>} : vector<8x4xf32>, vector<64x4xf32>, vector<8x64xf32> -> vector<8x64xf32>
    %16 = vector.broadcast %9 : vector<1x64xf32> to vector<8x64xf32>
    %17 = arith.addf %15, %16 : vector<8x64xf32>
    %18 = vector.extract_strided_slice %17 {offsets = [0, 0], sizes = [4, 64], strides = [1, 1]} : vector<8x64xf32> to vector<4x64xf32>
    %19 = vector.extract_strided_slice %17 {offsets = [4, 0], sizes = [4, 64], strides = [1, 1]} : vector<8x64xf32> to vector<4x64xf32>
    %20 = arith.addf %18, %19 : vector<4x64xf32>
    %21 = arith.negf %20 : vector<4x64xf32>
    %22 = math.exp %21 : vector<4x64xf32>
    %cst_15 = arith.constant 1.000000e+00 : f32
    %23 = vector.broadcast %cst_15 : f32 to vector<4x64xf32>
    %24 = arith.addf %23, %22 : vector<4x64xf32>
    %25 = arith.divf %23, %24 : vector<4x64xf32>
    %c0_16 = arith.constant 0 : index
    %c0_17 = arith.constant 0 : index
    %c0_18 = arith.constant 0 : index
    %26 = vector.load %arg1[%c0_16, %c0_17, %c0_18] : memref<4x64x256xf32, #tpu.memory_space<vmem>>, vector<4x64x256xf32>
    %27 = vector.shape_cast %25 : vector<4x64xf32> to vector<4x64x1xf32>
    %28 = vector.broadcast %27 : vector<4x64x1xf32> to vector<4x64x256xf32>
    %29 = arith.mulf %26, %28 : vector<4x64x256xf32>
    %c0_19 = arith.constant 0 : index
    %c0_20 = arith.constant 0 : index
    %c0_21 = arith.constant 0 : index
    %30 = vector.load %arg6[%c0_19, %c0_20, %c0_21] : memref<4x64x256xf32, #tpu.memory_space<vmem>>, vector<4x64x256xf32>
    tpu.vector_store %arg6[%c0_19, %c0_20, %c0_21], %29 {strides = array<i32>} : memref<4x64x256xf32, #tpu.memory_space<vmem>>, vector<4x64x256xf32>,
    return
  }
  func.func @transform_0(%arg0: i32) -> (i32, i32, i32) {
    %c0_i32 = arith.constant 0 : i32
    %c0_i32_0 = arith.constant 0 : i32
    %c0_i32_1 = arith.constant 0 : i32
    return %arg0, %c0_i32, %c0_i32_0 : i32, i32, i32
  }
  func.func @transform_1(%arg0: i32) -> (i32, i32) {
    %c0_i32 = arith.constant 0 : i32
    %c0_i32_0 = arith.constant 0 : i32
    %c0_i32_1 = arith.constant 0 : i32
    return %c0_i32, %c0_i32_0 : i32, i32
  }
  func.func @transform_2(%arg0: i32) -> (i32, i32) {
    %c0_i32 = arith.constant 0 : i32
    %c0_i32_0 = arith.constant 0 : i32
    %c0_i32_1 = arith.constant 0 : i32
    return %c0_i32, %c0_i32_0 : i32, i32
  }
  func.func @transform_3(%arg0: i32) -> (i32, i32) {
    %c0_i32 = arith.constant 0 : i32
    %c0_i32_0 = arith.constant 0 : i32
    %c0_i32_1 = arith.constant 0 : i32
    return %c0_i32, %c0_i32_0 : i32, i32
  }
  func.func @transform_4(%arg0: i32) -> (i32, i32) {
    %c0_i32 = arith.constant 0 : i32
    %c0_i32_0 = arith.constant 0 : i32
    %c0_i32_1 = arith.constant 0 : i32
    return %c0_i32, %c0_i32_0 : i32, i32
  }
  func.func @transform_5(%arg0: i32) -> (i32, i32, i32) {
    %c0_i32 = arith.constant 0 : i32
    %c0_i32_0 = arith.constant 0 : i32
    %c0_i32_1 = arith.constant 0 : i32
    return %arg0, %c0_i32, %c0_i32_0 : i32, i32, i32
  }
}

</mosaic_0001>

<llo_original>
// kernel: tpu_custom_call.1
$region0: #{tpu_custom_call.1}
  #allocation0 [shape = 'u32[]', space=smem, size = 0x4, offset = 0x4, fixed_abs, tag = 'smem constant byte address 0x4 - core index']
  #allocation1 [shape = 'u32[144,128]{1,0:T(1,128)}', space=vmem, size = 0x12000, scoped, tag = 'internal scratch']
  %s0 = inlined_call_operand.hbm [shape: f32[8,64,256], index: 0, kind: input, shape index: {}]
  %s1 = inlined_call_operand.vmem [shape: f32[4,64], index: 1, kind: input, shape index: {}]
  %s2 = inlined_call_operand.vmem [shape: f32[1,4], index: 2, kind: input, shape index: {}]
  %s3 = inlined_call_operand.vmem [shape: f32[64,4], index: 3, kind: input, shape index: {}]
  %s4 = inlined_call_operand.vmem [shape: f32[1,64], index: 4, kind: input, shape index: {}]
  %s5 = inlined_call_operand.hbm [shape: f32[8,64,256], index: 5, kind: output, shape index: {}]
  %s6 = sld [smem:[#allocation0]]
  $region57: #{tpu_custom_call.1} parent=0
    _
  %s8 = ssub.s32 1, %s6
  %s9 = scalar_select 0, %s8, %s6
  $region1: #{tpu_custom_call.1} parent=0
    #allocation2 [shape = 'u8[524288]{0}', space=vmem, size = 0x80000, scoped, tag = 'input window, operand 0']
    #allocation3 [shape = 's32[2]{0}', space=sflag, size = 0x8, scoped, tag = 'scoped memory for tpu_custom_call.1']
    #allocation4 [shape = 's32[2]{0}', space=sflag, size = 0x8, scoped, tag = 'scoped memory for tpu_custom_call.1']
    #allocation5 [shape = 'u8[524288]{0}', space=vmem, size = 0x80000, scoped, tag = 'output window, operand 0']
    %10 = vsyncpa [#allocation3], 0
    %s11 = scalar_lea.sflag [#allocation3], 1
    %12 = vsyncpa %s11, 0
    %13 = vsyncpa [#allocation4], 0
    %s14 = scalar_lea.sflag [#allocation4], 1
    %15 = vsyncpa %s14, 0
    loop: start=0, step=1, limit=4
    $region2: #{tpu_custom_call.1} parent=1 // loop_pre_header
      _
    $region3: #{tpu_custom_call.1} parent=1 // loop_header
      %s17 = sphi 0, %s21
      %p18 = scmp.ge.s32.totalorder %s17, 4
      %s27 = sphi 0, %s29
      %s30 = sphi 0, %s27
      %s31 = sphi 0, %s30
      %s47 = sphi 0, %s31
      %s51 = sphi 0, %s51
      %s53 = sphi 0, %s51
      %s54 = sphi 0, %s53
      %s68 = sphi 0, %s54
      %s72 = sphi 0, %s72
      %s74 = sphi 0, %s72
      %s75 = sphi 0, %s74
      %s89 = sphi 0, %s75
      %s93 = sphi 0, %s93
      %s95 = sphi 0, %s93
      %s96 = sphi 0, %s95
      %s110 = sphi 0, %s96
      %s114 = sphi 0, %s114
      %s116 = sphi 0, %s114
      %s117 = sphi 0, %s116
      %s131 = sphi 0, %s117
      %s137 = sphi 0, %s139
      %s140 = sphi 0, %s137
      %s141 = sphi 0, %s140
      %s157 = sphi 0, %s141
    $region4: #{tpu_custom_call.1} parent=1 // loop_header_branch
      %20 = sbr.rel (%p18) target = $region8
    $region5: #{tpu_custom_call.1} parent=1 // loop_body
      %s22 = ssub.s32 %s17, 1
      %s23 = ssub.s32 %s17, 2
      %s24 = sadd.s32 %s17, 1
      %s25 = ssub.s32 %s17, %s24
      %p26 = scmp.eq.s32.totalorder %s25, 0
      %s28 = sadd.s32 %s27, 1
      %s29 = scalar_select %p26, %s27, %s28
      %p32 = pneg %p26
      %p33 = scmp.eq.s32.totalorder %s17, 1
      %p34 = por %p32, %p33
      %p35 = scmp.ne.s32.totalorder %s27, %s30
      %p36 = scmp.eq.s32.totalorder %s17, 0
      %p37 = por %p35, %p36
      %p38 = scmp.ne.s32.totalorder %s27, %s30
      %p39 = scmp.eq.s32.totalorder %s22, 1
      %p40 = por %p38, %p39
      %p41 = scmp.ne.s32.totalorder %s30, %s31
      %p42 = scmp.eq.s32.totalorder %s22, 0
      %p43 = por %p41, %p42
      %p44 = scmp.ne.s32.totalorder %s30, %s31
      %p45 = scmp.eq.s32.totalorder %s23, 1
      %p46 = por %p44, %p45
      %p48 = scmp.ne.s32.totalorder %s31, %s47
      %p49 = scmp.eq.s32.totalorder %s23, 0
      %p50 = por %p48, %p49
      %s52 = sadd.s32 %s51, 1
      %p55 = scmp.eq.s32.totalorder %s17, 1
      %p56 = scmp.ne.s32.totalorder %s51, %s53
      %p57 = scmp.eq.s32.totalorder %s17, 0
      %p58 = por %p56, %p57
      %p59 = scmp.ne.s32.totalorder %s51, %s53
      %p60 = scmp.eq.s32.totalorder %s22, 1
      %p61 = por %p59, %p60
      %p62 = scmp.ne.s32.totalorder %s53, %s54
      %p63 = scmp.eq.s32.totalorder %s22, 0
      %p64 = por %p62, %p63
      %p65 = scmp.ne.s32.totalorder %s53, %s54
      %p66 = scmp.eq.s32.totalorder %s23, 1
      %p67 = por %p65, %p66
      %p69 = scmp.ne.s32.totalorder %s54, %s68
      %p70 = scmp.eq.s32.totalorder %s23, 0
      %p71 = por %p69, %p70
      %s73 = sadd.s32 %s72, 1
      %p76 = scmp.eq.s32.totalorder %s17, 1
      %p77 = scmp.ne.s32.totalorder %s72, %s74
      %p78 = scmp.eq.s32.totalorder %s17, 0
      %p79 = por %p77, %p78
      %p80 = scmp.ne.s32.totalorder %s72, %s74
      %p81 = scmp.eq.s32.totalorder %s22, 1
      %p82 = por %p80, %p81
      %p83 = scmp.ne.s32.totalorder %s74, %s75
      %p84 = scmp.eq.s32.totalorder %s22, 0
      %p85 = por %p83, %p84
      %p86 = scmp.ne.s32.totalorder %s74, %s75
      %p87 = scmp.eq.s32.totalorder %s23, 1
      %p88 = por %p86, %p87
      %p90 = scmp.ne.s32.totalorder %s75, %s89
      %p91 = scmp.eq.s32.totalorder %s23, 0
      %p92 = por %p90, %p91
      %s94 = sadd.s32 %s93, 1
      %p97 = scmp.eq.s32.totalorder %s17, 1
      %p98 = scmp.ne.s32.totalorder %s93, %s95
      %p99 = scmp.eq.s32.totalorder %s17, 0
      %p100 = por %p98, %p99
      %p101 = scmp.ne.s32.totalorder %s93, %s95
      %p102 = scmp.eq.s32.totalorder %s22, 1
      %p103 = por %p101, %p102
      %p104 = scmp.ne.s32.totalorder %s95, %s96
      %p105 = scmp.eq.s32.totalorder %s22, 0
      %p106 = por %p104, %p105
      %p107 = scmp.ne.s32.totalorder %s95, %s96
      %p108 = scmp.eq.s32.totalorder %s23, 1
      %p109 = por %p107, %p108
      %p111 = scmp.ne.s32.totalorder %s96, %s110
      %p112 = scmp.eq.s32.totalorder %s23, 0
      %p113 = por %p111, %p112
      %s115 = sadd.s32 %s114, 1
      %p118 = scmp.eq.s32.totalorder %s17, 1
      %p119 = scmp.ne.s32.totalorder %s114, %s116
      %p120 = scmp.eq.s32.totalorder %s17, 0
      %p121 = por %p119, %p120
      %p122 = scmp.ne.s32.totalorder %s114, %s116
      %p123 = scmp.eq.s32.totalorder %s22, 1
      %p124 = por %p122, %p123
      %p125 = scmp.ne.s32.totalorder %s116, %s117
      %p126 = scmp.eq.s32.totalorder %s22, 0
      %p127 = por %p125, %p126
      %p128 = scmp.ne.s32.totalorder %s116, %s117
      %p129 = scmp.eq.s32.totalorder %s23, 1
      %p130 = por %p128, %p129
      %p132 = scmp.ne.s32.totalorder %s117, %s131
      %p133 = scmp.eq.s32.totalorder %s23, 0
      %p134 = por %p132, %p133
      %s135 = ssub.s32 %s17, %s24
      %p136 = scmp.eq.s32.totalorder %s135, 0
      %s138 = sadd.s32 %s137, 1
      %s139 = scalar_select %p136, %s137, %s138
      %p142 = pneg %p136
      %p143 = scmp.eq.s32.totalorder %s17, 1
      %p144 = por %p142, %p143
      %p145 = scmp.ne.s32.totalorder %s137, %s140
      %p146 = scmp.eq.s32.totalorder %s17, 0
      %p147 = por %p145, %p146
      %p148 = scmp.ne.s32.totalorder %s137, %s140
      %p149 = scmp.eq.s32.totalorder %s22, 1
      %p150 = por %p148, %p149
      %p151 = scmp.ne.s32.totalorder %s140, %s141
      %p152 = scmp.eq.s32.totalorder %s22, 0
      %p153 = por %p151, %p152
      %p154 = scmp.ne.s32.totalorder %s140, %s141
      %p155 = scmp.eq.s32.totalorder %s23, 1
      %p156 = por %p154, %p155
      %p158 = scmp.ne.s32.totalorder %s141, %s157
      %p159 = scmp.eq.s32.totalorder %s23, 0
      %p160 = por %p158, %p159
      %p161 = scmp.le.s32.totalorder 1, %s17
      %p162 = scmp.lt.s32.totalorder %s17, 3
      %p163 = pnand %p161, %p162
      %p164 = pneg %p163
      // Predicated region
      $region9: #{tpu_custom_call.1} parent=5 // pred_check
        _
      $region10: #{tpu_custom_call.1} parent=5 // pred_check_branch
        %166 = sbr.rel (%p163) target = $region12
      $region11: #{tpu_custom_call.1} parent=5 // pred_region
        %s167 = ssub.s32 %s17, 1
        // Predicated region
        $region13: #{tpu_custom_call.1} parent=11 // pred_check
          %p168 = pneg %p64
        $region14: #{tpu_custom_call.1} parent=11 // pred_check_branch
          %170 = sbr.rel (%p168) target = $region16
        $region15: #{tpu_custom_call.1} parent=11 // pred_region
          _
        $region16: #{tpu_custom_call.1} parent=11 // pred_fallthru
          _
        // Predicated region
        $region17: #{tpu_custom_call.1} parent=11 // pred_check
          %p171 = pneg %p85
        $region18: #{tpu_custom_call.1} parent=11 // pred_check_branch
          %173 = sbr.rel (%p171) target = $region20
        $region19: #{tpu_custom_call.1} parent=11 // pred_region
          _
        $region20: #{tpu_custom_call.1} parent=11 // pred_fallthru
          _
        // Predicated region
        $region21: #{tpu_custom_call.1} parent=11 // pred_check
          %p174 = pneg %p106
        $region22: #{tpu_custom_call.1} parent=11 // pred_check_branch
          %176 = sbr.rel (%p174) target = $region24
        $region23: #{tpu_custom_call.1} parent=11 // pred_region
          _
        $region24: #{tpu_custom_call.1} parent=11 // pred_fallthru
          _
        // Predicated region
        $region25: #{tpu_custom_call.1} parent=11 // pred_check
          %p177 = pneg %p127
        $region26: #{tpu_custom_call.1} parent=11 // pred_check_branch
          %179 = sbr.rel (%p177) target = $region28
        $region27: #{tpu_custom_call.1} parent=11 // pred_region
          _
        $region28: #{tpu_custom_call.1} parent=11 // pred_fallthru
          _
      $region12: #{tpu_custom_call.1} parent=5 // pred_fallthru
        _
      %p180 = scmp.lt.s32.totalorder %s17, 2
      // Predicated region
      $region29: #{tpu_custom_call.1} parent=5 // pred_check
        %p181 = pneg %p180
      $region30: #{tpu_custom_call.1} parent=5 // pred_check_branch
        %183 = sbr.rel (%p181) target = $region32
      $region31: #{tpu_custom_call.1} parent=5 // pred_region
        // Predicated region
        $region33: #{tpu_custom_call.1} parent=31 // pred_check
          %p184 = pneg %p37
        $region34: #{tpu_custom_call.1} parent=31 // pred_check_branch
          %186 = sbr.rel (%p184) target = $region36
        $region35: #{tpu_custom_call.1} parent=31 // pred_region
          %s187 = sand.u32 %s27, 1
          %s188 = scalar_lea.sflag [#allocation3], %s187
          %s189 = sand.u32 %s27, 1
          %s190 = smul.addr %s189, 512
          %s191 = scalar_lea.vmem [#allocation2], %s190
          %s192 = smul.u32 4, %s17
          %s194 = ssub.s32 8192, 8192
          %195 = vsyncadd %s188, %s194
          %s196 = smul.addr %s192, 16
          %s197 = smul.addr %s196, 128
          %s198 = scalar_lea.hbm %s0, %s197
          %s199 = sshll.u32 %s191, 4
          %s200 = int_to_ptr.vmem [resolvable:$true] %s199
          %205 = dma.hbm_to_vmem [thread:$0]  %s198, 8192, %s200, %s188, 256, 256, 16
        $region36: #{tpu_custom_call.1} parent=31 // pred_fallthru
          _
      $region32: #{tpu_custom_call.1} parent=5 // pred_fallthru
        _
      %p206 = scmp.le.s32.totalorder 1, %s17
      %p207 = scmp.lt.s32.totalorder %s17, 3
      %p208 = pnand %p206, %p207
      %p209 = pneg %p208
      // Predicated region
      $region37: #{tpu_custom_call.1} parent=5 // pred_check
        _
      $region38: #{tpu_custom_call.1} parent=5 // pred_check_branch
        %211 = sbr.rel (%p208) target = $region40
      $region39: #{tpu_custom_call.1} parent=5 // pred_region
        %s212 = ssub.s32 %s17, 1
        %s213 = sand.u32 %s30, 1
        %s214 = scalar_lea.sflag [#allocation3], %s213
        %s215 = sand.u32 %s30, 1
        %s216 = smul.addr %s215, 512
        %s217 = scalar_lea.vmem [#allocation2], %s216
        // Predicated region
        $region41: #{tpu_custom_call.1} parent=39 // pred_check
          %p218 = pneg %p43
        $region42: #{tpu_custom_call.1} parent=39 // pred_check_branch
          %220 = sbr.rel (%p218) target = $region44
        $region43: #{tpu_custom_call.1} parent=39 // pred_region
          %221 = dma.done %s214, 8192
        $region44: #{tpu_custom_call.1} parent=39 // pred_fallthru
          _
        %s222 = sand.u32 %s30, 1
        %s223 = scalar_lea.sflag [#allocation3], %s222
        %s224 = sand.u32 %s30, 1
        %s225 = smul.addr %s224, 512
        %s226 = scalar_lea.vmem [#allocation2], %s225
        %p227 = pneg %p43
        %p228 = pneg %p40
        %p229 = pneg %p64
        %p230 = pneg %p61
        %p231 = pneg %p85
        %p232 = pneg %p82
        %p233 = pneg %p106
        %p234 = pneg %p103
        %p235 = pneg %p127
        %p236 = pneg %p124
        %p237 = pneg %p153
        %p238 = pneg %p150
        %s239 = sand.u32 %s140, 1
        %s240 = scalar_lea.sflag [#allocation4], %s239
        %s241 = sand.u32 %s140, 1
        %s242 = smul.addr %s241, 512
        %s243 = scalar_lea.vmem [#allocation5], %s242
        %s244 = smul.u32 4, %s22
        %s245 = smul.u32 4, %s22
        %v246 = vld [vmem:[%s217] sm:$0xff]
        %v247 = vld [vmem:[%s217 + $0x8] sm:$0xff]
        %v248 = vld [vmem:[%s217 + $0x10] sm:$0xff]
        %v249 = vld [vmem:[%s217 + $0x18] sm:$0xff]
        %v250 = vld [vmem:[%s217 + $0x20] sm:$0xff]
        %v251 = vld [vmem:[%s217 + $0x28] sm:$0xff]
        %v252 = vld [vmem:[%s217 + $0x30] sm:$0xff]
        %v253 = vld [vmem:[%s217 + $0x38] sm:$0xff]
        %v254 = vld [vmem:[%s217 + $0x40] sm:$0xff]
        %v255 = vld [vmem:[%s217 + $0x48] sm:$0xff]
        %v256 = vld [vmem:[%s217 + $0x50] sm:$0xff]
        %v257 = vld [vmem:[%s217 + $0x58] sm:$0xff]
        %v258 = vld [vmem:[%s217 + $0x60] sm:$0xff]
        %v259 = vld [vmem:[%s217 + $0x68] sm:$0xff]
        %v260 = vld [vmem:[%s217 + $0x70] sm:$0xff]
        %v261 = vld [vmem:[%s217 + $0x78] sm:$0xff]
        %v262 = vld [vmem:[%s217 + $0x80] sm:$0xff]
        %v263 = vld [vmem:[%s217 + $0x88] sm:$0xff]
        %v264 = vld [vmem:[%s217 + $0x90] sm:$0xff]
        %v265 = vld [vmem:[%s217 + $0x98] sm:$0xff]
        %v266 = vld [vmem:[%s217 + $0xa0] sm:$0xff]
        %v267 = vld [vmem:[%s217 + $0xa8] sm:$0xff]
        %v268 = vld [vmem:[%s217 + $0xb0] sm:$0xff]
        %v269 = vld [vmem:[%s217 + $0xb8] sm:$0xff]
        %v270 = vld [vmem:[%s217 + $0xc0] sm:$0xff]
        %v271 = vld [vmem:[%s217 + $0xc8] sm:$0xff]
        %v272 = vld [vmem:[%s217 + $0xd0] sm:$0xff]
        %v273 = vld [vmem:[%s217 + $0xd8] sm:$0xff]
        %v274 = vld [vmem:[%s217 + $0xe0] sm:$0xff]
        %v275 = vld [vmem:[%s217 + $0xe8] sm:$0xff]
        %v276 = vld [vmem:[%s217 + $0xf0] sm:$0xff]
        %v277 = vld [vmem:[%s217 + $0xf8] sm:$0xff]
        %v278 = vld [vmem:[%s217 + $0x100] sm:$0xff]
        %v279 = vld [vmem:[%s217 + $0x108] sm:$0xff]
        %v280 = vld [vmem:[%s217 + $0x110] sm:$0xff]
        %v281 = vld [vmem:[%s217 + $0x118] sm:$0xff]
        %v282 = vld [vmem:[%s217 + $0x120] sm:$0xff]
        %v283 = vld [vmem:[%s217 + $0x128] sm:$0xff]
        %v284 = vld [vmem:[%s217 + $0x130] sm:$0xff]
        %v285 = vld [vmem:[%s217 + $0x138] sm:$0xff]
        %v286 = vld [vmem:[%s217 + $0x140] sm:$0xff]
        %v287 = vld [vmem:[%s217 + $0x148] sm:$0xff]
        %v288 = vld [vmem:[%s217 + $0x150] sm:$0xff]
        %v289 = vld [vmem:[%s217 + $0x158] sm:$0xff]
        %v290 = vld [vmem:[%s217 + $0x160] sm:$0xff]
        %v291 = vld [vmem:[%s217 + $0x168] sm:$0xff]
        %v292 = vld [vmem:[%s217 + $0x170] sm:$0xff]
        %v293 = vld [vmem:[%s217 + $0x178] sm:$0xff]
        %v294 = vld [vmem:[%s217 + $0x180] sm:$0xff]
        %v295 = vld [vmem:[%s217 + $0x188] sm:$0xff]
        %v296 = vld [vmem:[%s217 + $0x190] sm:$0xff]
        %v297 = vld [vmem:[%s217 + $0x198] sm:$0xff]
        %v298 = vld [vmem:[%s217 + $0x1a0] sm:$0xff]
        %v299 = vld [vmem:[%s217 + $0x1a8] sm:$0xff]
        %v300 = vld [vmem:[%s217 + $0x1b0] sm:$0xff]
        %v301 = vld [vmem:[%s217 + $0x1b8] sm:$0xff]
        %v302 = vld [vmem:[%s217 + $0x1c0] sm:$0xff]
        %v303 = vld [vmem:[%s217 + $0x1c8] sm:$0xff]
        %v304 = vld [vmem:[%s217 + $0x1d0] sm:$0xff]
        %v305 = vld [vmem:[%s217 + $0x1d8] sm:$0xff]
        %v306 = vld [vmem:[%s217 + $0x1e0] sm:$0xff]
        %v307 = vld [vmem:[%s217 + $0x1e8] sm:$0xff]
        %v308 = vld [vmem:[%s217 + $0x1f0] sm:$0xff]
        %v309 = vld [vmem:[%s217 + $0x1f8] sm:$0xff]
        %v310 = vadd.f32 %v246, %v247
        %311 = vadd.xlane.f32.xlu0 %v310
        %v312 = vpop.xlane.xlu0 %311
        %v313 = vadd.f32 %v248, %v249
        %314 = vadd.xlane.f32.xlu0 %v313
        %v315 = vpop.xlane.xlu0 %314
        %v316 = vadd.f32 %v250, %v251
        %317 = vadd.xlane.f32.xlu0 %v316
        %v318 = vpop.xlane.xlu0 %317
        %v319 = vadd.f32 %v252, %v253
        %320 = vadd.xlane.f32.xlu0 %v319
        %v321 = vpop.xlane.xlu0 %320
        %v322 = vadd.f32 %v254, %v255
        %323 = vadd.xlane.f32.xlu0 %v322
        %v324 = vpop.xlane.xlu0 %323
        %v325 = vadd.f32 %v256, %v257
        %326 = vadd.xlane.f32.xlu0 %v325
        %v327 = vpop.xlane.xlu0 %326
        %v328 = vadd.f32 %v258, %v259
        %329 = vadd.xlane.f32.xlu0 %v328
        %v330 = vpop.xlane.xlu0 %329
        %v331 = vadd.f32 %v260, %v261
        %332 = vadd.xlane.f32.xlu0 %v331
        %v333 = vpop.xlane.xlu0 %332
        %v334 = vadd.f32 %v262, %v263
        %335 = vadd.xlane.f32.xlu0 %v334
        %v336 = vpop.xlane.xlu0 %335
        %v337 = vadd.f32 %v264, %v265
        %338 = vadd.xlane.f32.xlu0 %v337
        %v339 = vpop.xlane.xlu0 %338
        %v340 = vadd.f32 %v266, %v267
        %341 = vadd.xlane.f32.xlu0 %v340
        %v342 = vpop.xlane.xlu0 %341
        %v343 = vadd.f32 %v268, %v269
        %344 = vadd.xlane.f32.xlu0 %v343
        %v345 = vpop.xlane.xlu0 %344
        %v346 = vadd.f32 %v270, %v271
        %347 = vadd.xlane.f32.xlu0 %v346
        %v348 = vpop.xlane.xlu0 %347
        %v349 = vadd.f32 %v272, %v273
        %350 = vadd.xlane.f32.xlu0 %v349
        %v351 = vpop.xlane.xlu0 %350
        %v352 = vadd.f32 %v274, %v275
        %353 = vadd.xlane.f32.xlu0 %v352
        %v354 = vpop.xlane.xlu0 %353
        %v355 = vadd.f32 %v276, %v277
        %356 = vadd.xlane.f32.xlu0 %v355
        %v357 = vpop.xlane.xlu0 %356
        %v358 = vadd.f32 %v278, %v279
        %359 = vadd.xlane.f32.xlu0 %v358
        %v360 = vpop.xlane.xlu0 %359
        %v361 = vadd.f32 %v280, %v281
        %362 = vadd.xlane.f32.xlu0 %v361
        %v363 = vpop.xlane.xlu0 %362
        %v364 = vadd.f32 %v282, %v283
        %365 = vadd.xlane.f32.xlu0 %v364
        %v366 = vpop.xlane.xlu0 %365
        %v367 = vadd.f32 %v284, %v285
        %368 = vadd.xlane.f32.xlu0 %v367
        %v369 = vpop.xlane.xlu0 %368
        %v370 = vadd.f32 %v286, %v287
        %371 = vadd.xlane.f32.xlu0 %v370
        %v372 = vpop.xlane.xlu0 %371
        %v373 = vadd.f32 %v288, %v289
        %374 = vadd.xlane.f32.xlu0 %v373
        %v375 = vpop.xlane.xlu0 %374
        %v376 = vadd.f32 %v290, %v291
        %377 = vadd.xlane.f32.xlu0 %v376
        %v378 = vpop.xlane.xlu0 %377
        %v379 = vadd.f32 %v292, %v293
        %380 = vadd.xlane.f32.xlu0 %v379
        %v381 = vpop.xlane.xlu0 %380
        %v382 = vadd.f32 %v294, %v295
        %383 = vadd.xlane.f32.xlu0 %v382
        %v384 = vpop.xlane.xlu0 %383
        %v385 = vadd.f32 %v296, %v297
        %386 = vadd.xlane.f32.xlu0 %v385
        %v387 = vpop.xlane.xlu0 %386
        %v388 = vadd.f32 %v298, %v299
        %389 = vadd.xlane.f32.xlu0 %v388
        %v390 = vpop.xlane.xlu0 %389
        %v391 = vadd.f32 %v300, %v301
        %392 = vadd.xlane.f32.xlu0 %v391
        %v393 = vpop.xlane.xlu0 %392
        %v394 = vadd.f32 %v302, %v303
        %395 = vadd.xlane.f32.xlu0 %v394
        %v396 = vpop.xlane.xlu0 %395
        %v397 = vadd.f32 %v304, %v305
        %398 = vadd.xlane.f32.xlu0 %v397
        %v399 = vpop.xlane.xlu0 %398
        %v400 = vadd.f32 %v306, %v307
        %401 = vadd.xlane.f32.xlu0 %v400
        %v402 = vpop.xlane.xlu0 %401
        %v403 = vadd.f32 %v308, %v309
        %404 = vadd.xlane.f32.xlu0 %v403
        %v405 = vpop.xlane.xlu0 %404
        %v406 = vmul.f32 %v312, 0.00390625
        %v407 = vmul.f32 %v315, 0.00390625
        %v408 = vmul.f32 %v318, 0.00390625
        %v409 = vmul.f32 %v321, 0.00390625
        %v410 = vmul.f32 %v324, 0.00390625
        %v411 = vmul.f32 %v327, 0.00390625
        %v412 = vmul.f32 %v330, 0.00390625
        %v413 = vmul.f32 %v333, 0.00390625
        %v414 = vmul.f32 %v336, 0.00390625
        %v415 = vmul.f32 %v339, 0.00390625
        %v416 = vmul.f32 %v342, 0.00390625
        %v417 = vmul.f32 %v345, 0.00390625
        %v418 = vmul.f32 %v348, 0.00390625
        %v419 = vmul.f32 %v351, 0.00390625
        %v420 = vmul.f32 %v354, 0.00390625
        %v421 = vmul.f32 %v357, 0.00390625
        %v422 = vmul.f32 %v360, 0.00390625
        %v423 = vmul.f32 %v363, 0.00390625
        %v424 = vmul.f32 %v366, 0.00390625
        %v425 = vmul.f32 %v369, 0.00390625
        %v426 = vmul.f32 %v372, 0.00390625
        %v427 = vmul.f32 %v375, 0.00390625
        %v428 = vmul.f32 %v378, 0.00390625
        %v429 = vmul.f32 %v381, 0.00390625
        %v430 = vmul.f32 %v384, 0.00390625
        %v431 = vmul.f32 %v387, 0.00390625
        %v432 = vmul.f32 %v390, 0.00390625
        %v433 = vmul.f32 %v393, 0.00390625
        %v434 = vmul.f32 %v396, 0.00390625
        %v435 = vmul.f32 %v399, 0.00390625
        %v436 = vmul.f32 %v402, 0.00390625
        %v437 = vmul.f32 %v405, 0.00390625
        %v438 = vmax.f32 %v246, %v247
        %439 = vmax.xlane.f32.xlu0 %v438
        %v440 = vpop.xlane.xlu0 %439
        %v441 = vmax.f32 %v248, %v249
        %442 = vmax.xlane.f32.xlu0 %v441
        %v443 = vpop.xlane.xlu0 %442
        %v444 = vmax.f32 %v250, %v251
        %445 = vmax.xlane.f32.xlu0 %v444
        %v446 = vpop.xlane.xlu0 %445
        %v447 = vmax.f32 %v252, %v253
        %448 = vmax.xlane.f32.xlu0 %v447
        %v449 = vpop.xlane.xlu0 %448
        %v450 = vmax.f32 %v254, %v255
        %451 = vmax.xlane.f32.xlu0 %v450
        %v452 = vpop.xlane.xlu0 %451
        %v453 = vmax.f32 %v256, %v257
        %454 = vmax.xlane.f32.xlu0 %v453
        %v455 = vpop.xlane.xlu0 %454
        %v456 = vmax.f32 %v258, %v259
        %457 = vmax.xlane.f32.xlu0 %v456
        %v458 = vpop.xlane.xlu0 %457
        %v459 = vmax.f32 %v260, %v261
        %460 = vmax.xlane.f32.xlu0 %v459
        %v461 = vpop.xlane.xlu0 %460
        %v462 = vmax.f32 %v262, %v263
        %463 = vmax.xlane.f32.xlu0 %v462
        %v464 = vpop.xlane.xlu0 %463
        %v465 = vmax.f32 %v264, %v265
        %466 = vmax.xlane.f32.xlu0 %v465
        %v467 = vpop.xlane.xlu0 %466
        %v468 = vmax.f32 %v266, %v267
        %469 = vmax.xlane.f32.xlu0 %v468
        %v470 = vpop.xlane.xlu0 %469
        %v471 = vmax.f32 %v268, %v269
        %472 = vmax.xlane.f32.xlu0 %v471
        %v473 = vpop.xlane.xlu0 %472
        %v474 = vmax.f32 %v270, %v271
        %475 = vmax.xlane.f32.xlu0 %v474
        %v476 = vpop.xlane.xlu0 %475
        %v477 = vmax.f32 %v272, %v273
        %478 = vmax.xlane.f32.xlu0 %v477
        %v479 = vpop.xlane.xlu0 %478
        %v480 = vmax.f32 %v274, %v275
        %481 = vmax.xlane.f32.xlu0 %v480
        %v482 = vpop.xlane.xlu0 %481
        %v483 = vmax.f32 %v276, %v277
        %484 = vmax.xlane.f32.xlu0 %v483
        %v485 = vpop.xlane.xlu0 %484
        %v486 = vmax.f32 %v278, %v279
        %487 = vmax.xlane.f32.xlu0 %v486
        %v488 = vpop.xlane.xlu0 %487
        %v489 = vmax.f32 %v280, %v281
        %490 = vmax.xlane.f32.xlu0 %v489
        %v491 = vpop.xlane.xlu0 %490
        %v492 = vmax.f32 %v282, %v283
        %493 = vmax.xlane.f32.xlu0 %v492
        %v494 = vpop.xlane.xlu0 %493
        %v495 = vmax.f32 %v284, %v285
        %496 = vmax.xlane.f32.xlu0 %v495
        %v497 = vpop.xlane.xlu0 %496
        %v498 = vmax.f32 %v286, %v287
        %499 = vmax.xlane.f32.xlu0 %v498
        %v500 = vpop.xlane.xlu0 %499
        %v501 = vmax.f32 %v288, %v289
        %502 = vmax.xlane.f32.xlu0 %v501
        %v503 = vpop.xlane.xlu0 %502
        %v504 = vmax.f32 %v290, %v291
        %505 = vmax.xlane.f32.xlu0 %v504
        %v506 = vpop.xlane.xlu0 %505
        %v507 = vmax.f32 %v292, %v293
        %508 = vmax.xlane.f32.xlu0 %v507
        %v509 = vpop.xlane.xlu0 %508
        %v510 = vmax.f32 %v294, %v295
        %511 = vmax.xlane.f32.xlu0 %v510
        %v512 = vpop.xlane.xlu0 %511
        %v513 = vmax.f32 %v296, %v297
        %514 = vmax.xlane.f32.xlu0 %v513
        %v515 = vpop.xlane.xlu0 %514
        %v516 = vmax.f32 %v298, %v299
        %517 = vmax.xlane.f32.xlu0 %v516
        %v518 = vpop.xlane.xlu0 %517
        %v519 = vmax.f32 %v300, %v301
        %520 = vmax.xlane.f32.xlu0 %v519
        %v521 = vpop.xlane.xlu0 %520
        %v522 = vmax.f32 %v302, %v303
        %523 = vmax.xlane.f32.xlu0 %v522
        %v524 = vpop.xlane.xlu0 %523
        %v525 = vmax.f32 %v304, %v305
        %526 = vmax.xlane.f32.xlu0 %v525
        %v527 = vpop.xlane.xlu0 %526
        %v528 = vmax.f32 %v306, %v307
        %529 = vmax.xlane.f32.xlu0 %v528
        %v530 = vpop.xlane.xlu0 %529
        %v531 = vmax.f32 %v308, %v309
        %532 = vmax.xlane.f32.xlu0 %v531
        %v533 = vpop.xlane.xlu0 %532
        %v566 = vlaneseq
        %v567 = vand.u32 %v566, 127
        %v568 = vlaneseq
        %v569 = vshrl.u32 %v568, 7
        %v570 = vsub.s32 %v567, %v569
        %v571 = vrot.slane %v406, %v570
        %v572 = vadd.s32 %v567, 4294967288
        %v573 = vlaneseq
        %v574 = vshrl.u32 %v573, 7
        %v575 = vsub.s32 %v572, %v574
        %v576 = vrot.slane %v407, %v575
        %vm577 = vcmask 130112
        %v578 = vsel %vm577, %v576, %v571
        %v579 = vadd.s32 %v567, 4294967280
        %v580 = vlaneseq
        %v581 = vshrl.u32 %v580, 7
        %v582 = vsub.s32 %v579, %v581
        %v583 = vrot.slane %v408, %v582
        %vm584 = vcmask 195712
        %v585 = vsel %vm584, %v583, %v578
        %v586 = vadd.s32 %v567, 4294967272
        %v587 = vlaneseq
        %v588 = vshrl.u32 %v587, 7
        %v589 = vsub.s32 %v586, %v588
        %v590 = vrot.slane %v409, %v589
        %vm591 = vcmask 261312
        %v592 = vsel %vm591, %v590, %v585
        %v593 = vadd.s32 %v567, 4294967264
        %v594 = vlaneseq
        %v595 = vshrl.u32 %v594, 7
        %v596 = vsub.s32 %v593, %v595
        %v597 = vrot.slane %v410, %v596
        %vm598 = vcmask 326912
        %v599 = vsel %vm598, %v597, %v592
        %v600 = vadd.s32 %v567, 4294967256
        %v601 = vlaneseq
        %v602 = vshrl.u32 %v601, 7
        %v603 = vsub.s32 %v600, %v602
        %v604 = vrot.slane %v411, %v603
        %vm605 = vcmask 392512
        %v606 = vsel %vm605, %v604, %v599
        %v607 = vadd.s32 %v567, 4294967248
        %v608 = vlaneseq
        %v609 = vshrl.u32 %v608, 7
        %v610 = vsub.s32 %v607, %v609
        %v611 = vrot.slane %v412, %v610
        %vm612 = vcmask 458112
        %v613 = vsel %vm612, %v611, %v606
        %v614 = vadd.s32 %v567, 4294967240
        %v615 = vlaneseq
        %v616 = vshrl.u32 %v615, 7
        %v617 = vsub.s32 %v614, %v616
        %v618 = vrot.slane %v413, %v617
        %vm619 = vcmask 523712
        %v620 = vsel %vm619, %v618, %v613
        %v621 = vlaneseq
        %v622 = vshrl.u32 %v621, 7
        %v623 = vsub.s32 %v567, %v622
        %v624 = vrot.slane %v414, %v623
        %v625 = vlaneseq
        %v626 = vshrl.u32 %v625, 7
        %v627 = vsub.s32 %v572, %v626
        %v628 = vrot.slane %v415, %v627
        %v629 = vsel %vm577, %v628, %v624
        %v630 = vlaneseq
        %v631 = vshrl.u32 %v630, 7
        %v632 = vsub.s32 %v579, %v631
        %v633 = vrot.slane %v416, %v632
        %v634 = vsel %vm584, %v633, %v629
        %v635 = vlaneseq
        %v636 = vshrl.u32 %v635, 7
        %v637 = vsub.s32 %v586, %v636
        %v638 = vrot.slane %v417, %v637
        %v639 = vsel %vm591, %v638, %v634
        %v640 = vlaneseq
        %v641 = vshrl.u32 %v640, 7
        %v642 = vsub.s32 %v593, %v641
        %v643 = vrot.slane %v418, %v642
        %v644 = vsel %vm598, %v643, %v639
        %v645 = vlaneseq
        %v646 = vshrl.u32 %v645, 7
        %v647 = vsub.s32 %v600, %v646
        %v648 = vrot.slane %v419, %v647
        %v649 = vsel %vm605, %v648, %v644
        %v650 = vlaneseq
        %v651 = vshrl.u32 %v650, 7
        %v652 = vsub.s32 %v607, %v651
        %v653 = vrot.slane %v420, %v652
        %v654 = vsel %vm612, %v653, %v649
        %v655 = vlaneseq
        %v656 = vshrl.u32 %v655, 7
        %v657 = vsub.s32 %v614, %v656
        %v658 = vrot.slane %v421, %v657
        %v659 = vsel %vm619, %v658, %v654
        %v660 = vlaneseq
        %v661 = vshrl.u32 %v660, 7
        %v662 = vsub.s32 %v567, %v661
        %v663 = vrot.slane %v422, %v662
        %v664 = vlaneseq
        %v665 = vshrl.u32 %v664, 7
        %v666 = vsub.s32 %v572, %v665
        %v667 = vrot.slane %v423, %v666
        %v668 = vsel %vm577, %v667, %v663
        %v669 = vlaneseq
        %v670 = vshrl.u32 %v669, 7
        %v671 = vsub.s32 %v579, %v670
        %v672 = vrot.slane %v424, %v671
        %v673 = vsel %vm584, %v672, %v668
        %v674 = vlaneseq
        %v675 = vshrl.u32 %v674, 7
        %v676 = vsub.s32 %v586, %v675
        %v677 = vrot.slane %v425, %v676
        %v678 = vsel %vm591, %v677, %v673
        %v679 = vlaneseq
        %v680 = vshrl.u32 %v679, 7
        %v681 = vsub.s32 %v593, %v680
        %v682 = vrot.slane %v426, %v681
        %v683 = vsel %vm598, %v682, %v678
        %v684 = vlaneseq
        %v685 = vshrl.u32 %v684, 7
        %v686 = vsub.s32 %v600, %v685
        %v687 = vrot.slane %v427, %v686
        %v688 = vsel %vm605, %v687, %v683
        %v689 = vlaneseq
        %v690 = vshrl.u32 %v689, 7
        %v691 = vsub.s32 %v607, %v690
        %v692 = vrot.slane %v428, %v691
        %v693 = vsel %vm612, %v692, %v688
        %v694 = vlaneseq
        %v695 = vshrl.u32 %v694, 7
        %v696 = vsub.s32 %v614, %v695
        %v697 = vrot.slane %v429, %v696
        %v698 = vsel %vm619, %v697, %v693
        %v699 = vlaneseq
        %v700 = vshrl.u32 %v699, 7
        %v701 = vsub.s32 %v567, %v700
        %v702 = vrot.slane %v430, %v701
        %v703 = vlaneseq
        %v704 = vshrl.u32 %v703, 7
        %v705 = vsub.s32 %v572, %v704
        %v706 = vrot.slane %v431, %v705
        %v707 = vsel %vm577, %v706, %v702
        %v708 = vlaneseq
        %v709 = vshrl.u32 %v708, 7
        %v710 = vsub.s32 %v579, %v709
        %v711 = vrot.slane %v432, %v710
        %v712 = vsel %vm584, %v711, %v707
        %v713 = vlaneseq
        %v714 = vshrl.u32 %v713, 7
        %v715 = vsub.s32 %v586, %v714
        %v716 = vrot.slane %v433, %v715
        %v717 = vsel %vm591, %v716, %v712
        %v718 = vlaneseq
        %v719 = vshrl.u32 %v718, 7
        %v720 = vsub.s32 %v593, %v719
        %v721 = vrot.slane %v434, %v720
        %v722 = vsel %vm598, %v721, %v717
        %v723 = vlaneseq
        %v724 = vshrl.u32 %v723, 7
        %v725 = vsub.s32 %v600, %v724
        %v726 = vrot.slane %v435, %v725
        %v727 = vsel %vm605, %v726, %v722
        %v728 = vlaneseq
        %v729 = vshrl.u32 %v728, 7
        %v730 = vsub.s32 %v607, %v729
        %v731 = vrot.slane %v436, %v730
        %v732 = vsel %vm612, %v731, %v727
        %v733 = vlaneseq
        %v734 = vshrl.u32 %v733, 7
        %v735 = vsub.s32 %v614, %v734
        %v736 = vrot.slane %v437, %v735
        %v737 = vsel %vm619, %v736, %v732
        %vm738 = vcmask 1041409
        %v739 = vsel %vm738, %v659, %v620
        %vm740 = vcmask 1042434
        %v741 = vsel %vm740, %v698, %v739
        %vm742 = vcmask 1043459
        %v743 = vsel %vm742, %v737, %v741
        %v777 = vlaneseq
        %v778 = vshrl.u32 %v777, 7
        %v779 = vsub.s32 %v567, %v778
        %v780 = vrot.slane %v440, %v779
        %v781 = vlaneseq
        %v782 = vshrl.u32 %v781, 7
        %v783 = vsub.s32 %v572, %v782
        %v784 = vrot.slane %v443, %v783
        %v785 = vsel %vm577, %v784, %v780
        %v786 = vlaneseq
        %v787 = vshrl.u32 %v786, 7
        %v788 = vsub.s32 %v579, %v787
        %v789 = vrot.slane %v446, %v788
        %v790 = vsel %vm584, %v789, %v785
        %v791 = vlaneseq
        %v792 = vshrl.u32 %v791, 7
        %v793 = vsub.s32 %v586, %v792
        %v794 = vrot.slane %v449, %v793
        %v795 = vsel %vm591, %v794, %v790
        %v796 = vlaneseq
        %v797 = vshrl.u32 %v796, 7
        %v798 = vsub.s32 %v593, %v797
        %v799 = vrot.slane %v452, %v798
        %v800 = vsel %vm598, %v799, %v795
        %v801 = vlaneseq
        %v802 = vshrl.u32 %v801, 7
        %v803 = vsub.s32 %v600, %v802
        %v804 = vrot.slane %v455, %v803
        %v805 = vsel %vm605, %v804, %v800
        %v806 = vlaneseq
        %v807 = vshrl.u32 %v806, 7
        %v808 = vsub.s32 %v607, %v807
        %v809 = vrot.slane %v458, %v808
        %v810 = vsel %vm612, %v809, %v805
        %v811 = vlaneseq
        %v812 = vshrl.u32 %v811, 7
        %v813 = vsub.s32 %v614, %v812
        %v814 = vrot.slane %v461, %v813
        %v815 = vsel %vm619, %v814, %v810
        %v816 = vlaneseq
        %v817 = vshrl.u32 %v816, 7
        %v818 = vsub.s32 %v567, %v817
        %v819 = vrot.slane %v464, %v818
        %v820 = vlaneseq
        %v821 = vshrl.u32 %v820, 7
        %v822 = vsub.s32 %v572, %v821
        %v823 = vrot.slane %v467, %v822
        %v824 = vsel %vm577, %v823, %v819
        %v825 = vlaneseq
        %v826 = vshrl.u32 %v825, 7
        %v827 = vsub.s32 %v579, %v826
        %v828 = vrot.slane %v470, %v827
        %v829 = vsel %vm584, %v828, %v824
        %v830 = vlaneseq
        %v831 = vshrl.u32 %v830, 7
        %v832 = vsub.s32 %v586, %v831
        %v833 = vrot.slane %v473, %v832
        %v834 = vsel %vm591, %v833, %v829
        %v835 = vlaneseq
        %v836 = vshrl.u32 %v835, 7
        %v837 = vsub.s32 %v593, %v836
        %v838 = vrot.slane %v476, %v837
        %v839 = vsel %vm598, %v838, %v834
        %v840 = vlaneseq
        %v841 = vshrl.u32 %v840, 7
        %v842 = vsub.s32 %v600, %v841
        %v843 = vrot.slane %v479, %v842
        %v844 = vsel %vm605, %v843, %v839
        %v845 = vlaneseq
        %v846 = vshrl.u32 %v845, 7
        %v847 = vsub.s32 %v607, %v846
        %v848 = vrot.slane %v482, %v847
        %v849 = vsel %vm612, %v848, %v844
        %v850 = vlaneseq
        %v851 = vshrl.u32 %v850, 7
        %v852 = vsub.s32 %v614, %v851
        %v853 = vrot.slane %v485, %v852
        %v854 = vsel %vm619, %v853, %v849
        %v855 = vlaneseq
        %v856 = vshrl.u32 %v855, 7
        %v857 = vsub.s32 %v567, %v856
        %v858 = vrot.slane %v488, %v857
        %v859 = vlaneseq
        %v860 = vshrl.u32 %v859, 7
        %v861 = vsub.s32 %v572, %v860
        %v862 = vrot.slane %v491, %v861
        %v863 = vsel %vm577, %v862, %v858
        %v864 = vlaneseq
        %v865 = vshrl.u32 %v864, 7
        %v866 = vsub.s32 %v579, %v865
        %v867 = vrot.slane %v494, %v866
        %v868 = vsel %vm584, %v867, %v863
        %v869 = vlaneseq
        %v870 = vshrl.u32 %v869, 7
        %v871 = vsub.s32 %v586, %v870
        %v872 = vrot.slane %v497, %v871
        %v873 = vsel %vm591, %v872, %v868
        %v874 = vlaneseq
        %v875 = vshrl.u32 %v874, 7
        %v876 = vsub.s32 %v593, %v875
        %v877 = vrot.slane %v500, %v876
        %v878 = vsel %vm598, %v877, %v873
        %v879 = vlaneseq
        %v880 = vshrl.u32 %v879, 7
        %v881 = vsub.s32 %v600, %v880
        %v882 = vrot.slane %v503, %v881
        %v883 = vsel %vm605, %v882, %v878
        %v884 = vlaneseq
        %v885 = vshrl.u32 %v884, 7
        %v886 = vsub.s32 %v607, %v885
        %v887 = vrot.slane %v506, %v886
        %v888 = vsel %vm612, %v887, %v883
        %v889 = vlaneseq
        %v890 = vshrl.u32 %v889, 7
        %v891 = vsub.s32 %v614, %v890
        %v892 = vrot.slane %v509, %v891
        %v893 = vsel %vm619, %v892, %v888
        %v894 = vlaneseq
        %v895 = vshrl.u32 %v894, 7
        %v896 = vsub.s32 %v567, %v895
        %v897 = vrot.slane %v512, %v896
        %v898 = vlaneseq
        %v899 = vshrl.u32 %v898, 7
        %v900 = vsub.s32 %v572, %v899
        %v901 = vrot.slane %v515, %v900
        %v902 = vsel %vm577, %v901, %v897
        %v903 = vlaneseq
        %v904 = vshrl.u32 %v903, 7
        %v905 = vsub.s32 %v579, %v904
        %v906 = vrot.slane %v518, %v905
        %v907 = vsel %vm584, %v906, %v902
        %v908 = vlaneseq
        %v909 = vshrl.u32 %v908, 7
        %v910 = vsub.s32 %v586, %v909
        %v911 = vrot.slane %v521, %v910
        %v912 = vsel %vm591, %v911, %v907
        %v913 = vlaneseq
        %v914 = vshrl.u32 %v913, 7
        %v915 = vsub.s32 %v593, %v914
        %v916 = vrot.slane %v524, %v915
        %v917 = vsel %vm598, %v916, %v912
        %v918 = vlaneseq
        %v919 = vshrl.u32 %v918, 7
        %v920 = vsub.s32 %v600, %v919
        %v921 = vrot.slane %v527, %v920
        %v922 = vsel %vm605, %v921, %v917
        %v923 = vlaneseq
        %v924 = vshrl.u32 %v923, 7
        %v925 = vsub.s32 %v607, %v924
        %v926 = vrot.slane %v530, %v925
        %v927 = vsel %vm612, %v926, %v922
        %v928 = vlaneseq
        %v929 = vshrl.u32 %v928, 7
        %v930 = vsub.s32 %v614, %v929
        %v931 = vrot.slane %v533, %v930
        %v932 = vsel %vm619, %v931, %v927
        %vm933 = vcmask 1045509
        %v934 = vsel %vm933, %v854, %v815
        %vm935 = vcmask 1046534
        %v936 = vsel %vm935, %v893, %v934
        %vm937 = vcmask 1047559
        %v938 = vsel %vm937, %v932, %v936
        %vm940 = vcmask 1043456
        %v941 = vsel %vm940, %v743, %v938
        %v942 = vld [vmem:[%s1] sm:$0xf]
        %v943 = vld [vmem:[%s2] sm:$0x1]
        %v944 = vld [vmem:[%s3] sm:$0xff]
        %v945 = vld [vmem:[%s3 + $0x8] sm:$0xff]
        %v946 = vld [vmem:[%s3 + $0x10] sm:$0xff]
        %v947 = vld [vmem:[%s3 + $0x18] sm:$0xff]
        %v948 = vld [vmem:[%s3 + $0x20] sm:$0xff]
        %v949 = vld [vmem:[%s3 + $0x28] sm:$0xff]
        %v950 = vld [vmem:[%s3 + $0x30] sm:$0xff]
        %v951 = vld [vmem:[%s3 + $0x38] sm:$0xff]
        %v952 = vld [vmem:[%s4] sm:$0x1]
        %v954 = vlaneseq
        %v955 = vshrl.u32 %v954, 7
        %v956 = vsub.s32 0, %v955
        %v957 = vrot.slane %v943, %v956
        %vm959 = vcmask 523264
        %v961 = vsel %vm959, %v941, 0
        %v964 = vsel %vm959, %v942, 0
        %966 = vmatprep.subr.mxu0 0.0
        %967 = vmatpush1.xpose.msra.mxu0 %v964
        %968 = vmatprep.subr.mxu0 0.0
        %969 = vmatpush1.xpose.msra.mxu0 0.0
        %970 = vmatprep.subr.mxu0 0.0
        %971 = vmatpush1.xpose.msra.mxu0 0.0
        %972 = vmatprep.subr.mxu0 0.0
        %973 = vmatpush1.xpose.msra.mxu0 0.0
        %974 = vmatprep.subr.mxu0 0.0
        %975 = vmatpush1.xpose.msra.mxu0 0.0
        %976 = vmatprep.subr.mxu0 0.0
        %977 = vmatpush1.xpose.msra.mxu0 0.0
        %978 = vmatprep.subr.mxu0 0.0
        %979 = vmatpush1.xpose.msra.mxu0 0.0
        %980 = vmatprep.subr.mxu0 0.0
        %981 = vmatpush1.xpose.msra.mxu0 0.0
        %982 = vmatprep.subr.mxu0 0.0
        %983 = vmatpush1.xpose.msra.mxu0 0.0
        %984 = vmatprep.subr.mxu0 0.0
        %985 = vmatpush1.xpose.msra.mxu0 0.0
        %986 = vmatprep.subr.mxu0 0.0
        %987 = vmatpush1.xpose.msra.mxu0 0.0
        %988 = vmatprep.subr.mxu0 0.0
        %989 = vmatpush1.xpose.msra.mxu0 0.0
        %990 = vmatprep.subr.mxu0 0.0
        %991 = vmatpush1.xpose.msra.mxu0 0.0
        %992 = vmatprep.subr.mxu0 0.0
        %993 = vmatpush1.xpose.msra.mxu0 0.0
        %994 = vmatprep.subr.mxu0 0.0
        %995 = vmatpush1.xpose.msra.mxu0 0.0
        %996 = vmatprep.subr.mxu0 0.0
        %997 = vmatpush1.xpose.msra.mxu0 0.0
        %998 = vmatprep.subr.mxu0 0.0
        %999 = vmatpush1.xpose.msra.mxu0 0.0
        %1000 = vmatprep.subr.mxu0 0.0
        %1001 = vmatpush1.xpose.msra.mxu0 0.0
        %1002 = vmatprep.subr.mxu0 0.0
        %1003 = vmatpush1.xpose.msra.mxu0 0.0
        %1004 = vmatprep.subr.mxu0 0.0
        %1005 = vmatpush1.xpose.msra.mxu0 0.0
        %1006 = vmatprep.subr.mxu0 0.0
        %1007 = vmatpush1.xpose.msra.mxu0 0.0
        %1008 = vmatprep.subr.mxu0 0.0
        %1009 = vmatpush1.xpose.msra.mxu0 0.0
        %1010 = vmatprep.subr.mxu0 0.0
        %1011 = vmatpush1.xpose.msra.mxu0 0.0
        %1012 = vmatprep.subr.mxu0 0.0
        %1013 = vmatpush1.xpose.msra.mxu0 0.0
        %1014 = vmatprep.subr.mxu0 0.0
        %1015 = vmatpush1.xpose.msra.mxu0 0.0
        %1016 = vmatprep.subr.mxu0 0.0
        %1017 = vmatpush1.xpose.msra.mxu0 0.0
        %1018 = vmatprep.subr.mxu0 0.0
        %1019 = vmatpush1.xpose.msra.mxu0 0.0
        %1020 = vmatprep.subr.mxu0 0.0
        %1021 = vmatpush1.xpose.msra.mxu0 0.0
        %1022 = vmatprep.subr.mxu0 0.0
        %1023 = vmatpush1.xpose.msra.mxu0 0.0
        %1024 = vmatprep.subr.mxu0 0.0
        %1025 = vmatpush1.xpose.msra.mxu0 0.0
        %1026 = vmatprep.subr.mxu0 0.0
        %1027 = vmatpush1.xpose.msra.mxu0 0.0
        %1028 = vmatprep.subr.mxu0 0.0
        %1029 = vmatpush1.xpose.msra.mxu0 0.0
        %1030 = vmatprep.mubr.f32.mxu0 0.0
        %1031 = vmatmul.mubr.f32.gmra.mrb[0].mxu0 %v961
        %v1032 = vpop.f32.mrb[0].mxu0
        %v1033 = vadd.f32 %v957, %v1032
        %v1034 = vpop.f32.mrb[0].mxu0
        %1035 = vdwg.mxu0
        %v1036 = vmax.f32 %v1033, 0.0
        %v1038 = vlaneseq
        %v1039 = vshrl.u32 %v1038, 7
        %v1040 = vsub.s32 0, %v1039
        %v1041 = vrot.slane %v952, %v1040
        %vm1043 = vcmask 31744
        %v1045 = vsel %vm1043, %v1036, 0
        %v1048 = vsel %vm1043, %v944, 0
        %v1051 = vsel %vm1043, %v945, 0
        %v1054 = vsel %vm1043, %v946, 0
        %v1057 = vsel %vm1043, %v947, 0
        %v1060 = vsel %vm1043, %v948, 0
        %v1063 = vsel %vm1043, %v949, 0
        %v1066 = vsel %vm1043, %v950, 0
        %v1069 = vsel %vm1043, %v951, 0
        %1071 = vmatprep.subr.mxu0 0.0
        %1072 = vmatpush1.xpose.msra.mxu0 %v1048
        %1073 = vmatprep.subr.mxu0 0.0
        %1074 = vmatpush1.xpose.msra.mxu0 %v1051
        %1075 = vmatprep.subr.mxu0 0.0
        %1076 = vmatpush1.xpose.msra.mxu0 %v1054
        %1077 = vmatprep.subr.mxu0 0.0
        %1078 = vmatpush1.xpose.msra.mxu0 %v1057
        %1079 = vmatprep.subr.mxu0 0.0
        %1080 = vmatpush1.xpose.msra.mxu0 %v1060
        %1081 = vmatprep.subr.mxu0 0.0
        %1082 = vmatpush1.xpose.msra.mxu0 %v1063
        %1083 = vmatprep.subr.mxu0 0.0
        %1084 = vmatpush1.xpose.msra.mxu0 %v1066
        %1085 = vmatprep.subr.mxu0 0.0
        %1086 = vmatpush1.xpose.msra.mxu0 %v1069
        %1087 = vmatprep.subr.mxu0 0.0
        %1088 = vmatpush1.xpose.msra.mxu0 0.0
        %1089 = vmatprep.subr.mxu0 0.0
        %1090 = vmatpush1.xpose.msra.mxu0 0.0
        %1091 = vmatprep.subr.mxu0 0.0
        %1092 = vmatpush1.xpose.msra.mxu0 0.0
        %1093 = vmatprep.subr.mxu0 0.0
        %1094 = vmatpush1.xpose.msra.mxu0 0.0
        %1095 = vmatprep.subr.mxu0 0.0
        %1096 = vmatpush1.xpose.msra.mxu0 0.0
        %1097 = vmatprep.subr.mxu0 0.0
        %1098 = vmatpush1.xpose.msra.mxu0 0.0
        %1099 = vmatprep.subr.mxu0 0.0
        %1100 = vmatpush1.xpose.msra.mxu0 0.0
        %1101 = vmatprep.subr.mxu0 0.0
        %1102 = vmatpush1.xpose.msra.mxu0 0.0
        %1103 = vmatprep.subr.mxu0 0.0
        %1104 = vmatpush1.xpose.msra.mxu0 0.0
        %1105 = vmatprep.subr.mxu0 0.0
        %1106 = vmatpush1.xpose.msra.mxu0 0.0
        %1107 = vmatprep.subr.mxu0 0.0
        %1108 = vmatpush1.xpose.msra.mxu0 0.0
        %1109 = vmatprep.subr.mxu0 0.0
        %1110 = vmatpush1.xpose.msra.mxu0 0.0
        %1111 = vmatprep.subr.mxu0 0.0
        %1112 = vmatpush1.xpose.msra.mxu0 0.0
        %1113 = vmatprep.subr.mxu0 0.0
        %1114 = vmatpush1.xpose.msra.mxu0 0.0
        %1115 = vmatprep.subr.mxu0 0.0
        %1116 = vmatpush1.xpose.msra.mxu0 0.0
        %1117 = vmatprep.subr.mxu0 0.0
        %1118 = vmatpush1.xpose.msra.mxu0 0.0
        %1119 = vmatprep.subr.mxu0 0.0
        %1120 = vmatpush1.xpose.msra.mxu0 0.0
        %1121 = vmatprep.subr.mxu0 0.0
        %1122 = vmatpush1.xpose.msra.mxu0 0.0
        %1123 = vmatprep.subr.mxu0 0.0
        %1124 = vmatpush1.xpose.msra.mxu0 0.0
        %1125 = vmatprep.subr.mxu0 0.0
        %1126 = vmatpush1.xpose.msra.mxu0 0.0
        %1127 = vmatprep.subr.mxu0 0.0
        %1128 = vmatpush1.xpose.msra.mxu0 0.0
        %1129 = vmatprep.subr.mxu0 0.0
        %1130 = vmatpush1.xpose.msra.mxu0 0.0
        %1131 = vmatprep.subr.mxu0 0.0
        %1132 = vmatpush1.xpose.msra.mxu0 0.0
        %1133 = vmatprep.subr.mxu0 0.0
        %1134 = vmatpush1.xpose.msra.mxu0 0.0
        %1135 = vmatprep.mubr.f32.mxu0 0.0
        %1136 = vmatmul.mubr.f32.gmra.mrb[0].mxu0 %v1045
        %v1137 = vpop.f32.mrb[0].mxu0
        %v1138 = vadd.f32 %v1041, %v1137
        %v1139 = vpop.f32.mrb[0].mxu0
        %1140 = vdwg.mxu0
        %v1142 = vrot.slane %v1138, 4
        %v1144 = vadd.f32 %v1138, %v1142
        %v1145 = vxor.u32 %v1144, 2147483648
        %v1146 = vmul.f32 %v1145, 1.442695
        %v1147 = vpow.pop %v1146
        %v1148 = vadd.f32 %v1147, 1.0
        %v1149 = vrcp.pop %v1148
        %v1150 = vmul.f32 1.0, %v1149
        %v1151 = vlaneseq
        %v1152 = vshrl.u32 %v1151, 7
        %v1153 = vsub.s32 0, %v1152
        %v1154 = vrot.slane %v1150, %v1153
        %1156 = vbcast.lane.b32.xlu0 %v1154, 256
        %v1157 = vpop.permute.xlu0 %1156
        %s1159 = sor.u32 256, 8
        %1160 = vbcast.lane.b32.xlu0 %v1154, %s1159
        %v1161 = vpop.permute.xlu0 %1160
        %s1163 = sor.u32 256, 16
        %1164 = vbcast.lane.b32.xlu0 %v1154, %s1163
        %v1165 = vpop.permute.xlu0 %1164
        %s1167 = sor.u32 256, 24
        %1168 = vbcast.lane.b32.xlu0 %v1154, %s1167
        %v1169 = vpop.permute.xlu0 %1168
        %s1171 = sor.u32 256, 32
        %1172 = vbcast.lane.b32.xlu0 %v1154, %s1171
        %v1173 = vpop.permute.xlu0 %1172
        %s1175 = sor.u32 256, 40
        %1176 = vbcast.lane.b32.xlu0 %v1154, %s1175
        %v1177 = vpop.permute.xlu0 %1176
        %s1179 = sor.u32 256, 48
        %1180 = vbcast.lane.b32.xlu0 %v1154, %s1179
        %v1181 = vpop.permute.xlu0 %1180
        %s1183 = sor.u32 256, 56
        %1184 = vbcast.lane.b32.xlu0 %v1154, %s1183
        %v1185 = vpop.permute.xlu0 %1184
        %v1186 = vlaneseq
        %v1187 = vshrl.u32 %v1186, 7
        %v1188 = vsub.s32 1, %v1187
        %v1189 = vrot.slane %v1150, %v1188
        %1191 = vbcast.lane.b32.xlu0 %v1189, 256
        %v1192 = vpop.permute.xlu0 %1191
        %s1194 = sor.u32 256, 8
        %1195 = vbcast.lane.b32.xlu0 %v1189, %s1194
        %v1196 = vpop.permute.xlu0 %1195
        %s1198 = sor.u32 256, 16
        %1199 = vbcast.lane.b32.xlu0 %v1189, %s1198
        %v1200 = vpop.permute.xlu0 %1199
        %s1202 = sor.u32 256, 24
        %1203 = vbcast.lane.b32.xlu0 %v1189, %s1202
        %v1204 = vpop.permute.xlu0 %1203
        %s1206 = sor.u32 256, 32
        %1207 = vbcast.lane.b32.xlu0 %v1189, %s1206
        %v1208 = vpop.permute.xlu0 %1207
        %s1210 = sor.u32 256, 40
        %1211 = vbcast.lane.b32.xlu0 %v1189, %s1210
        %v1212 = vpop.permute.xlu0 %1211
        %s1214 = sor.u32 256, 48
        %1215 = vbcast.lane.b32.xlu0 %v1189, %s1214
        %v1216 = vpop.permute.xlu0 %1215
        %s1218 = sor.u32 256, 56
        %1219 = vbcast.lane.b32.xlu0 %v1189, %s1218
        %v1220 = vpop.permute.xlu0 %1219
        %v1221 = vlaneseq
        %v1222 = vshrl.u32 %v1221, 7
        %v1223 = vsub.s32 2, %v1222
        %v1224 = vrot.slane %v1150, %v1223
        %1226 = vbcast.lane.b32.xlu0 %v1224, 256
        %v1227 = vpop.permute.xlu0 %1226
        %s1229 = sor.u32 256, 8
        %1230 = vbcast.lane.b32.xlu0 %v1224, %s1229
        %v1231 = vpop.permute.xlu0 %1230
        %s1233 = sor.u32 256, 16
        %1234 = vbcast.lane.b32.xlu0 %v1224, %s1233
        %v1235 = vpop.permute.xlu0 %1234
        %s1237 = sor.u32 256, 24
        %1238 = vbcast.lane.b32.xlu0 %v1224, %s1237
        %v1239 = vpop.permute.xlu0 %1238
        %s1241 = sor.u32 256, 32
        %1242 = vbcast.lane.b32.xlu0 %v1224, %s1241
        %v1243 = vpop.permute.xlu0 %1242
        %s1245 = sor.u32 256, 40
        %1246 = vbcast.lane.b32.xlu0 %v1224, %s1245
        %v1247 = vpop.permute.xlu0 %1246
        %s1249 = sor.u32 256, 48
        %1250 = vbcast.lane.b32.xlu0 %v1224, %s1249
        %v1251 = vpop.permute.xlu0 %1250
        %s1253 = sor.u32 256, 56
        %1254 = vbcast.lane.b32.xlu0 %v1224, %s1253
        %v1255 = vpop.permute.xlu0 %1254
        %v1256 = vlaneseq
        %v1257 = vshrl.u32 %v1256, 7
        %v1258 = vsub.s32 3, %v1257
        %v1259 = vrot.slane %v1150, %v1258
        %1261 = vbcast.lane.b32.xlu0 %v1259, 256
        %v1262 = vpop.permute.xlu0 %1261
        %s1264 = sor.u32 256, 8
        %1265 = vbcast.lane.b32.xlu0 %v1259, %s1264
        %v1266 = vpop.permute.xlu0 %1265
        %s1268 = sor.u32 256, 16
        %1269 = vbcast.lane.b32.xlu0 %v1259, %s1268
        %v1270 = vpop.permute.xlu0 %1269
        %s1272 = sor.u32 256, 24
        %1273 = vbcast.lane.b32.xlu0 %v1259, %s1272
        %v1274 = vpop.permute.xlu0 %1273
        %s1276 = sor.u32 256, 32
        %1277 = vbcast.lane.b32.xlu0 %v1259, %s1276
        %v1278 = vpop.permute.xlu0 %1277
        %s1280 = sor.u32 256, 40
        %1281 = vbcast.lane.b32.xlu0 %v1259, %s1280
        %v1282 = vpop.permute.xlu0 %1281
        %s1284 = sor.u32 256, 48
        %1285 = vbcast.lane.b32.xlu0 %v1259, %s1284
        %v1286 = vpop.permute.xlu0 %1285
        %s1288 = sor.u32 256, 56
        %1289 = vbcast.lane.b32.xlu0 %v1259, %s1288
        %v1290 = vpop.permute.xlu0 %1289
        %v1291 = vmul.f32 %v246, %v1157
        %v1292 = vmul.f32 %v247, %v1157
        %v1293 = vmul.f32 %v248, %v1161
        %v1294 = vmul.f32 %v249, %v1161
        %v1295 = vmul.f32 %v250, %v1165
        %v1296 = vmul.f32 %v251, %v1165
        %v1297 = vmul.f32 %v252, %v1169
        %v1298 = vmul.f32 %v253, %v1169
        %v1299 = vmul.f32 %v254, %v1173
        %v1300 = vmul.f32 %v255, %v1173
        %v1301 = vmul.f32 %v256, %v1177
        %v1302 = vmul.f32 %v257, %v1177
        %v1303 = vmul.f32 %v258, %v1181
        %v1304 = vmul.f32 %v259, %v1181
        %v1305 = vmul.f32 %v260, %v1185
        %v1306 = vmul.f32 %v261, %v1185
        %v1307 = vmul.f32 %v262, %v1192
        %v1308 = vmul.f32 %v263, %v1192
        %v1309 = vmul.f32 %v264, %v1196
        %v1310 = vmul.f32 %v265, %v1196
        %v1311 = vmul.f32 %v266, %v1200
        %v1312 = vmul.f32 %v267, %v1200
        %v1313 = vmul.f32 %v268, %v1204
        %v1314 = vmul.f32 %v269, %v1204
        %v1315 = vmul.f32 %v270, %v1208
        %v1316 = vmul.f32 %v271, %v1208
        %v1317 = vmul.f32 %v272, %v1212
        %v1318 = vmul.f32 %v273, %v1212
        %v1319 = vmul.f32 %v274, %v1216
        %v1320 = vmul.f32 %v275, %v1216
        %v1321 = vmul.f32 %v276, %v1220
        %v1322 = vmul.f32 %v277, %v1220
        %v1323 = vmul.f32 %v278, %v1227
        %v1324 = vmul.f32 %v279, %v1227
        %v1325 = vmul.f32 %v280, %v1231
        %v1326 = vmul.f32 %v281, %v1231
        %v1327 = vmul.f32 %v282, %v1235
        %v1328 = vmul.f32 %v283, %v1235
        %v1329 = vmul.f32 %v284, %v1239
        %v1330 = vmul.f32 %v285, %v1239
        %v1331 = vmul.f32 %v286, %v1243
        %v1332 = vmul.f32 %v287, %v1243
        %v1333 = vmul.f32 %v288, %v1247
        %v1334 = vmul.f32 %v289, %v1247
        %v1335 = vmul.f32 %v290, %v1251
        %v1336 = vmul.f32 %v291, %v1251
        %v1337 = vmul.f32 %v292, %v1255
        %v1338 = vmul.f32 %v293, %v1255
        %v1339 = vmul.f32 %v294, %v1262
        %v1340 = vmul.f32 %v295, %v1262
        %v1341 = vmul.f32 %v296, %v1266
        %v1342 = vmul.f32 %v297, %v1266
        %v1343 = vmul.f32 %v298, %v1270
        %v1344 = vmul.f32 %v299, %v1270
        %v1345 = vmul.f32 %v300, %v1274
        %v1346 = vmul.f32 %v301, %v1274
        %v1347 = vmul.f32 %v302, %v1278
        %v1348 = vmul.f32 %v303, %v1278
        %v1349 = vmul.f32 %v304, %v1282
        %v1350 = vmul.f32 %v305, %v1282
        %v1351 = vmul.f32 %v306, %v1286
        %v1352 = vmul.f32 %v307, %v1286
        %v1353 = vmul.f32 %v308, %v1290
        %v1354 = vmul.f32 %v309, %v1290
        %1355 = vst [vmem:[%s243] sm:$0xff] %v1291
        %1356 = vst [vmem:[%s243 + $0x8] sm:$0xff] %v1292
        %1357 = vst [vmem:[%s243 + $0x10] sm:$0xff] %v1293
        %1358 = vst [vmem:[%s243 + $0x18] sm:$0xff] %v1294
        %1359 = vst [vmem:[%s243 + $0x20] sm:$0xff] %v1295
        %1360 = vst [vmem:[%s243 + $0x28] sm:$0xff] %v1296
        %1361 = vst [vmem:[%s243 + $0x30] sm:$0xff] %v1297
        %1362 = vst [vmem:[%s243 + $0x38] sm:$0xff] %v1298
        %1363 = vst [vmem:[%s243 + $0x40] sm:$0xff] %v1299
        %1364 = vst [vmem:[%s243 + $0x48] sm:$0xff] %v1300
        %1365 = vst [vmem:[%s243 + $0x50] sm:$0xff] %v1301
        %1366 = vst [vmem:[%s243 + $0x58] sm:$0xff] %v1302
        %1367 = vst [vmem:[%s243 + $0x60] sm:$0xff] %v1303
        %1368 = vst [vmem:[%s243 + $0x68] sm:$0xff] %v1304
        %1369 = vst [vmem:[%s243 + $0x70] sm:$0xff] %v1305
        %1370 = vst [vmem:[%s243 + $0x78] sm:$0xff] %v1306
        %1371 = vst [vmem:[%s243 + $0x80] sm:$0xff] %v1307
        %1372 = vst [vmem:[%s243 + $0x88] sm:$0xff] %v1308
        %1373 = vst [vmem:[%s243 + $0x90] sm:$0xff] %v1309
        %1374 = vst [vmem:[%s243 + $0x98] sm:$0xff] %v1310
        %1375 = vst [vmem:[%s243 + $0xa0] sm:$0xff] %v1311
        %1376 = vst [vmem:[%s243 + $0xa8] sm:$0xff] %v1312
        %1377 = vst [vmem:[%s243 + $0xb0] sm:$0xff] %v1313
        %1378 = vst [vmem:[%s243 + $0xb8] sm:$0xff] %v1314
        %1379 = vst [vmem:[%s243 + $0xc0] sm:$0xff] %v1315
        %1380 = vst [vmem:[%s243 + $0xc8] sm:$0xff] %v1316
        %1381 = vst [vmem:[%s243 + $0xd0] sm:$0xff] %v1317
        %1382 = vst [vmem:[%s243 + $0xd8] sm:$0xff] %v1318
        %1383 = vst [vmem:[%s243 + $0xe0] sm:$0xff] %v1319
        %1384 = vst [vmem:[%s243 + $0xe8] sm:$0xff] %v1320
        %1385 = vst [vmem:[%s243 + $0xf0] sm:$0xff] %v1321
        %1386 = vst [vmem:[%s243 + $0xf8] sm:$0xff] %v1322
        %1387 = vst [vmem:[%s243 + $0x100] sm:$0xff] %v1323
        %1388 = vst [vmem:[%s243 + $0x108] sm:$0xff] %v1324
        %1389 = vst [vmem:[%s243 + $0x110] sm:$0xff] %v1325
        %1390 = vst [vmem:[%s243 + $0x118] sm:$0xff] %v1326
        %1391 = vst [vmem:[%s243 + $0x120] sm:$0xff] %v1327
        %1392 = vst [vmem:[%s243 + $0x128] sm:$0xff] %v1328
        %1393 = vst [vmem:[%s243 + $0x130] sm:$0xff] %v1329
        %1394 = vst [vmem:[%s243 + $0x138] sm:$0xff] %v1330
        %1395 = vst [vmem:[%s243 + $0x140] sm:$0xff] %v1331
        %1396 = vst [vmem:[%s243 + $0x148] sm:$0xff] %v1332
        %1397 = vst [vmem:[%s243 + $0x150] sm:$0xff] %v1333
        %1398 = vst [vmem:[%s243 + $0x158] sm:$0xff] %v1334
        %1399 = vst [vmem:[%s243 + $0x160] sm:$0xff] %v1335
        %1400 = vst [vmem:[%s243 + $0x168] sm:$0xff] %v1336
        %1401 = vst [vmem:[%s243 + $0x170] sm:$0xff] %v1337
        %1402 = vst [vmem:[%s243 + $0x178] sm:$0xff] %v1338
        %1403 = vst [vmem:[%s243 + $0x180] sm:$0xff] %v1339
        %1404 = vst [vmem:[%s243 + $0x188] sm:$0xff] %v1340
        %1405 = vst [vmem:[%s243 + $0x190] sm:$0xff] %v1341
        %1406 = vst [vmem:[%s243 + $0x198] sm:$0xff] %v1342
        %1407 = vst [vmem:[%s243 + $0x1a0] sm:$0xff] %v1343
        %1408 = vst [vmem:[%s243 + $0x1a8] sm:$0xff] %v1344
        %1409 = vst [vmem:[%s243 + $0x1b0] sm:$0xff] %v1345
        %1410 = vst [vmem:[%s243 + $0x1b8] sm:$0xff] %v1346
        %1411 = vst [vmem:[%s243 + $0x1c0] sm:$0xff] %v1347
        %1412 = vst [vmem:[%s243 + $0x1c8] sm:$0xff] %v1348
        %1413 = vst [vmem:[%s243 + $0x1d0] sm:$0xff] %v1349
        %1414 = vst [vmem:[%s243 + $0x1d8] sm:$0xff] %v1350
        %1415 = vst [vmem:[%s243 + $0x1e0] sm:$0xff] %v1351
        %1416 = vst [vmem:[%s243 + $0x1e8] sm:$0xff] %v1352
        %1417 = vst [vmem:[%s243 + $0x1f0] sm:$0xff] %v1353
        %1418 = vst [vmem:[%s243 + $0x1f8] sm:$0xff] %v1354
        %s1419 = sand.u32 %s140, 1
        %s1420 = scalar_lea.sflag [#allocation4], %s1419
        %s1421 = sand.u32 %s140, 1
        %s1422 = smul.addr %s1421, 512
        %s1423 = scalar_lea.vmem [#allocation5], %s1422
        // Predicated region
        $region45: #{tpu_custom_call.1} parent=39 // pred_check
          %p1424 = pneg %p150
        $region46: #{tpu_custom_call.1} parent=39 // pred_check_branch
          %1426 = sbr.rel (%p1424) target = $region48
        $region47: #{tpu_custom_call.1} parent=39 // pred_region
          %s1427 = smul.u32 4, %s22
          %s1429 = ssub.s32 8192, 8192
          %1430 = vsyncadd %s1420, %s1429
          %s1431 = smul.addr %s1427, 16
          %s1432 = smul.addr %s1431, 128
          %s1433 = scalar_lea.hbm %s5, %s1432
          %s1434 = sshll.u32 %s1423, 4
          %s1435 = int_to_ptr.vmem [resolvable:$true] %s1434
          %1440 = dma.vmem_to_hbm [thread:$0]  %s1435, 8192, %s1433, %s1420, 256, 256, 16
        $region48: #{tpu_custom_call.1} parent=39 // pred_fallthru
          _
      $region40: #{tpu_custom_call.1} parent=5 // pred_fallthru
        _
      %p1441 = scmp.le.s32.totalorder 2, %s17
      // Predicated region
      $region49: #{tpu_custom_call.1} parent=5 // pred_check
        %p1442 = pneg %p1441
      $region50: #{tpu_custom_call.1} parent=5 // pred_check_branch
        %1444 = sbr.rel (%p1442) target = $region52
      $region51: #{tpu_custom_call.1} parent=5 // pred_region
        %s1445 = ssub.s32 %s17, 2
        // Predicated region
        $region53: #{tpu_custom_call.1} parent=51 // pred_check
          %p1446 = pneg %p156
        $region54: #{tpu_custom_call.1} parent=51 // pred_check_branch
          %1448 = sbr.rel (%p1446) target = $region56
        $region55: #{tpu_custom_call.1} parent=51 // pred_region
          %s1449 = sand.u32 %s141, 1
          %s1450 = scalar_lea.sflag [#allocation4], %s1449
          %s1451 = sand.u32 %s141, 1
          %s1452 = smul.addr %s1451, 512
          %s1453 = scalar_lea.vmem [#allocation5], %s1452
          %1454 = dma.done %s1450, 8192
        $region56: #{tpu_custom_call.1} parent=51 // pred_fallthru
          _
      $region52: #{tpu_custom_call.1} parent=5 // pred_fallthru
        _
    $region6: #{tpu_custom_call.1} parent=1 // loop_footer
      %s21 = sadd.s32 1, %s17
    $region7: #{tpu_custom_call.1} parent=1 // loop_footer_branch
      %16 = sbr.rel target = $region3
    $region8: #{tpu_custom_call.1} parent=1 // loop_exit
      _
    %1455 = vsyncpa [#allocation3], 1
    %s1456 = scalar_lea.sflag [#allocation3], 1
    %1457 = vsyncpa %s1456, 1
    %1458 = vsyncpa [#allocation4], 1
    %s1459 = scalar_lea.sflag [#allocation4], 1
    %1460 = vsyncpa %s1459, 1

</llo_original>
